<compile_context>
chip_gen: v7x
topology: tpu7x:2x2x1
jax: 0.10.0
libtpu: 0.0.40
codegen_flags: <defaults>
</compile_context>

<pallas_src>
import math

import jax
import jax.numpy as jnp
from jax import lax
from jax.experimental import pallas as pl
from jax.experimental.pallas import tpu as pltpu


# ----------------------------------------------------------------------------
# Hardware detection / VMEM budgeting
# ----------------------------------------------------------------------------

def _detect_tpu_generation():
    try:
        kind = jax.devices()[0].device_kind.lower()
    except Exception:
        return "unknown"
    if "v7" in kind:
        return "v7x"
    if "v6" in kind:
        return "v6e"
    if "v5" in kind and ("lite" in kind or "v5e" in kind):
        return "v5e"
    return "unknown"


def _physical_vmem_bytes(gen):
    # Prefer the Pallas hardware query; fall back to per-generation constants.
    try:
        info = pltpu.get_tpu_info()
        v = int(getattr(info, "vmem_capacity_bytes", 0) or 0)
        if v > 0:
            return v
    except Exception:
        pass
    if gen == "v7x":
        return 64 << 20
    if gen in ("v5e", "v6e"):
        return 128 << 20
    return 64 << 20  # conservative default for unknown chips


def _vmem_estimate_bytes(tq, lp, d, in_isz, out_isz, sc_isz):
    kv = 2 * 2 * lp * d * in_isz       # K and V blocks, double-buffered
    qb = 2 * tq * d * in_isz           # q tile, double-buffered
    ob = 2 * tq * d * out_isz          # out tile, double-buffered
    sb = 2 * tq * lp * sc_isz          # score-out tile, double-buffered
    tmp = 4 * tq * lp * 4              # live f32 softmax temps (score, e, p) + slack
    return kv + qb + ob + sb + tmp


def _choose_tiling(L, D, in_isz, out_isz, sc_isz, gen, phys_vmem):
    # Budget leaves headroom for compiler-internal scratch.
    budget = max(min(phys_vmem - (32 << 20), 96 << 20), 16 << 20)
    # v6e (128 MiB) can afford TQ=512; v5e store path is fragile (cap 256);
    # v7x (64 MiB) is budgeted down below via the estimate.
    cap = 512 if gen == "v6e" else 256

    # Single full-length tile when small (full-dim blocks are exempt from the
    # (8,128) divisibility rule, and no padding is needed).
    if L <= cap and _vmem_estimate_bytes(L, L, D, in_isz, out_isz, sc_isz) <= budget:
        return L, L

    for cand in (512, 256, 128):
        if cand > cap:
            continue
        lp = pl.cdiv(L, cand) * cand
        if _vmem_estimate_bytes(cand, lp, D, in_isz, out_isz, sc_isz) <= budget:
            return cand, lp

    cand = 128  # last resort; may spill but stays bounded at O(TQ * L)
    return cand, pl.cdiv(L, cand) * cand


# ----------------------------------------------------------------------------
# Kernel
# ----------------------------------------------------------------------------

def _make_sdpa_kernel(l_true, l_pad, exp_in_bf16, precision):
    def kernel(q_ref, k_ref, v_ref, o_ref, s_ref):
        # q_ref: (TQ, D)  k_ref/v_ref: (Lp, D)  o_ref: (TQ, D)  s_ref: (TQ, Lp)
        d = q_ref.shape[-1]
        scale = jnp.asarray(1.0 / math.sqrt(d), dtype=q_ref.dtype)

        # Fold 1/sqrt(d) into q (TQ*D multiplies instead of TQ*Lp).
        q = q_ref[...] * scale
        k = k_ref[...]
        v = v_ref[...]

        # score = (q / sqrt(d)) @ k^T, contracting the last dims of both
        # operands -- the MXU consumes the transposed-RHS form natively, no
        # materialized k.T.  f32 accumulation regardless of input dtype.
        score = lax.dot_general(
            q, k,
            dimension_numbers=(((1,), (1,)), ((), ())),
            preferred_element_type=jnp.float32,
            precision=precision,
        )

        if l_pad > l_true:
            # Mask padded key columns out of the softmax.
            col = lax.broadcasted_iota(jnp.int32, score.shape, 1)
            score = jnp.where(col < l_true, score, jnp.float32(-1e30))

        # TODO(synk): optional `mask` argument (masked_fill(mask == 0, -e)) is
        # not wired in; the wrapper asserts mask is None.

        # Numerically stable softmax over the last dim, elementwise math in f32
        # (v5e VPU/EUP have no bf16 path).
        m = jnp.max(score, axis=-1, keepdims=True)
        z = score - m
        if exp_in_bf16:
            # bf16 EUP path (v6e/v7x only, and only when the returned score is
            # bf16) -- the single EUP is the compute-side binding unit here.
            ex = jnp.exp(z.astype(jnp.bfloat16)).astype(jnp.float32)
        else:
            ex = jnp.exp(z)
        denom = jnp.sum(ex, axis=-1, keepdims=True)
        # Exact reciprocal: the normalized score map is a returned output.
        p = ex * pl.reciprocal(denom, approx=False)

        # p @ v with the matmul inputs in v's dtype (bf16 stays bf16 on the
        # MXU), f32 accumulation.
        out = jnp.dot(p.astype(v.dtype), v,
                      preferred_element_type=jnp.float32,
                      precision=precision)

        o_ref[...] = out.astype(o_ref.dtype)
        s_ref[...] = p.astype(s_ref.dtype)

    return kernel


# ----------------------------------------------------------------------------
# Wrapper (matches the PyTorch module's forward: returns (out, score))
# ----------------------------------------------------------------------------

def scale_dot_product_attention3(q, k, v, mask=None, e=1e-12, *,
                                 tq=None, score_dtype=None, precision=None):
    """Pallas forward of ScaleDotProductAttention3; returns (out, score)."""
    # TODO(synk): mask path (masked_fill(mask == 0, -e)) not implemented.
    assert mask is None, "mask is not supported by this Pallas kernel yet"
    del e

    B, H, L, D = q.shape
    assert k.shape == (B, H, L, D) and v.shape == (B, H, L, D)

    out_dtype = q.dtype
    score_dt = jnp.dtype(score_dtype) if score_dtype is not None else jnp.dtype(q.dtype)
    in_isz = jnp.dtype(q.dtype).itemsize
    out_isz = jnp.dtype(out_dtype).itemsize
    sc_isz = score_dt.itemsize

    gen = _detect_tpu_generation()
    phys_vmem = _physical_vmem_bytes(gen)

    if tq is None:
        tq, Lp = _choose_tiling(L, D, in_isz, out_isz, sc_isz, gen, phys_vmem)
    else:
        assert tq == L or tq % 8 == 0, "tq must be the full length or a multiple of 8"
        Lp = pl.cdiv(L, tq) * tq

    # Pad the length axis so Lp % tq == 0; padded key columns are masked inside
    # the kernel and padded q rows are sliced off below.
    if Lp != L:
        pad = ((0, 0), (0, 0), (0, Lp - L), (0, 0))
        qp = jnp.pad(q, pad)
        kp = jnp.pad(k, pad)
        vp = jnp.pad(v, pad)
    else:
        qp, kp, vp = q, k, v

    n_q = Lp // tq
    grid = (B, H, n_q)

    q_spec = pl.BlockSpec((None, None, tq, D), lambda b, h, i: (b, h, i, 0))
    # K/V index_maps ignore the q-tile axis -> blocks stay VMEM-resident across
    # the sequential ("arbitrary") inner iterations (no re-DMA per q tile).
    kv_spec = pl.BlockSpec((None, None, Lp, D), lambda b, h, i: (b, h, 0, 0))
    out_spec = pl.BlockSpec((None, None, tq, D), lambda b, h, i: (b, h, i, 0))
    score_spec = pl.BlockSpec((None, None, tq, Lp), lambda b, h, i: (b, h, i, 0))

    exp_in_bf16 = (score_dt == jnp.bfloat16) and gen in ("v6e", "v7x")
    kernel = _make_sdpa_kernel(L, Lp, exp_in_bf16, precision)

    # Explicit scoped-VMEM limit sized from the real buffers (the defaults are
    # only 16 MiB on v5e / 32 MiB on v6e & v7x).
    est = _vmem_estimate_bytes(tq, Lp, D, in_isz, out_isz, sc_isz)
    vmem_limit = max(32 << 20, est * 5 // 4)
    vmem_limit = int(min(vmem_limit, phys_vmem - (16 << 20)))

    cost = pl.CostEstimate(
        flops=2 * 2 * B * H * Lp * Lp * D,          # q@k^T and p@v
        transcendentals=B * H * Lp * Lp,            # exp in softmax
        bytes_accessed=(3 * B * H * Lp * D * in_isz       # q, k, v in
                        + B * H * Lp * D * out_isz        # out
                        + B * H * Lp * Lp * sc_isz),      # score (dominant)
    )

    out, score = pl.pallas_call(
        kernel,
        out_shape=(
            jax.ShapeDtypeStruct((B, H, Lp, D), out_dtype),
            jax.ShapeDtypeStruct((B, H, Lp, Lp), score_dt),
        ),
        grid_spec=pltpu.PrefetchScalarGridSpec(
            num_scalar_prefetch=0,
            grid=grid,
            in_specs=[q_spec, kv_spec, kv_spec],
            out_specs=(out_spec, score_spec),
        ),
        compiler_params=pltpu.CompilerParams(
            dimension_semantics=("parallel", "parallel", "arbitrary"),
            vmem_limit_bytes=vmem_limit,
        ),
        cost_estimate=cost,
    )(qp, kp, vp)

    if Lp != L:
        out = out[:, :, :L, :]
        score = score[:, :, :L, :L]
    return out, score


# ----------------------------------------------------------------------------
# Reference + self-test
# ----------------------------------------------------------------------------

def _reference(q, k, v):
    d = k.shape[-1]
    score = jnp.einsum("bhld,bhmd->bhlm", q, k) / math.sqrt(d)
    score = jax.nn.softmax(score, axis=-1)
    out = jnp.einsum("bhlm,bhmd->bhld", score, v)
    return out, score


if __name__ == "__main__":
    key = jax.random.PRNGKey(0)

    # Case 1: small shapes consistent with the module (single full-length tile).
    B, H, L, D = 2, 4, 8, 32
    kq, kk, kv = jax.random.split(key, 3)
    q = jax.random.normal(kq, (B, H, L, D), dtype=jnp.float32)
    k = jax.random.normal(kk, (B, H, L, D), dtype=jnp.float32)
    v = jax.random.normal(kv, (B, H, L, D), dtype=jnp.float32)

    out, score = scale_dot_product_attention3(q, k, v)
    jax.block_until_ready((out, score))
    ref_out, ref_score = _reference(q, k, v)
    assert jnp.allclose(out, ref_out, atol=1e-5, rtol=1e-5), "out mismatch"
    assert jnp.allclose(score, ref_score, atol=1e-5, rtol=1e-5), "score mismatch"

    # Case 2: exercises the padded / masked-key-column path (L % tq != 0).
    B2, H2, L2, D2 = 1, 2, 40, 32
    kq2, kk2, kv2 = jax.random.split(jax.random.PRNGKey(1), 3)
    q2 = jax.random.normal(kq2, (B2, H2, L2, D2), dtype=jnp.float32)
    k2 = jax.random.normal(kk2, (B2, H2, L2, D2), dtype=jnp.float32)
    v2 = jax.random.normal(kv2, (B2, H2, L2, D2), dtype=jnp.float32)

    out2, score2 = scale_dot_product_attention3(q2, k2, v2, tq=16)
    jax.block_until_ready((out2, score2))
    ref_out2, ref_score2 = _reference(q2, k2, v2)
    assert jnp.allclose(out2, ref_out2, atol=1e-5, rtol=1e-5), "padded out mismatch"
    assert jnp.allclose(score2, ref_score2, atol=1e-5, rtol=1e-5), "padded score mismatch"

    print("KERNEL_OK")
</pallas_src>

<mosaic_0001>
module attributes {stable_mosaic.version = 11 : i64} {
  func.func @kernel(%arg0: i32, %arg1: i32, %arg2: i32, %arg3: memref<1x1x8x32xf32, #tpu.memory_space<vmem>>, %arg4: memref<1x1x8x32xf32, #tpu.memory_space<vmem>>, %arg5: memref<1x1x8x32xf32, #tpu.memory_space<vmem>>, %arg6: memref<1x1x8x32xf32, #tpu.memory_space<vmem>>, %arg7: memref<1x1x8x8xf32, #tpu.memory_space<vmem>>) attributes {dimension_semantics = [#tpu.dimension_semantics<parallel>, #tpu.dimension_semantics<parallel>, #tpu.dimension_semantics<arbitrary>], iteration_bounds = array<i64: 2, 4, 1>, scalar_prefetch = 0 : i64, scratch_operands = 0 : i64, tpu.core_type = #tpu.core_type<tc>, window_params = [{transform_indices = @transform_0, window_bounds = array<i64: 1, 1, 8, 32>}, {transform_indices = @transform_1, window_bounds = array<i64: 1, 1, 8, 32>}, {transform_indices = @transform_2, window_bounds = array<i64: 1, 1, 8, 32>}, {transform_indices = @transform_3, window_bounds = array<i64: 1, 1, 8, 32>}, {transform_indices = @transform_4, window_bounds = array<i64: 1, 1, 8, 8>}]} {
    %c0 = arith.constant 0 : index
    %c0_0 = arith.constant 0 : index
    %c0_1 = arith.constant 0 : index
    %c0_2 = arith.constant 0 : index
    %0 = vector.load %arg3[%c0, %c0_0, %c0_1, %c0_2] : memref<1x1x8x32xf32, #tpu.memory_space<vmem>>, vector<1x1x8x32xf32>
    %1 = vector.shape_cast %0 : vector<1x1x8x32xf32> to vector<8x32xf32>
    %cst = arith.constant 0.176776692 : f32
    %2 = vector.broadcast %cst : f32 to vector<8x32xf32>
    %3 = arith.mulf %1, %2 : vector<8x32xf32>
    %c0_3 = arith.constant 0 : index
    %c0_4 = arith.constant 0 : index
    %c0_5 = arith.constant 0 : index
    %c0_6 = arith.constant 0 : index
    %4 = vector.load %arg4[%c0_3, %c0_4, %c0_5, %c0_6] : memref<1x1x8x32xf32, #tpu.memory_space<vmem>>, vector<1x1x8x32xf32>
    %5 = vector.shape_cast %4 : vector<1x1x8x32xf32> to vector<8x32xf32>
    %c0_7 = arith.constant 0 : index
    %c0_8 = arith.constant 0 : index
    %c0_9 = arith.constant 0 : index
    %c0_10 = arith.constant 0 : index
    %6 = vector.load %arg5[%c0_7, %c0_8, %c0_9, %c0_10] : memref<1x1x8x32xf32, #tpu.memory_space<vmem>>, vector<1x1x8x32xf32>
    %7 = vector.shape_cast %6 : vector<1x1x8x32xf32> to vector<8x32xf32>
    %cst_11 = arith.constant dense<0.000000e+00> : vector<8x8xf32>
    %8 = tpu.matmul %3, %5, %cst_11 {dimension_numbers = #tpu.dot_dimension_numbers<[1], [1], [0], [0], [0, 0, 1, 0], [], []>} : vector<8x32xf32>, vector<8x32xf32>, vector<8x8xf32> -> vector<8x8xf32>
    %cst_12 = arith.constant dense<0xFF800000> : vector<8xf32>
    %9 = vector.multi_reduction <maximumf>, %8, %cst_12 [1] : vector<8x8xf32> to vector<8xf32>
    %10 = vector.shape_cast %9 : vector<8xf32> to vector<8x1xf32>
    %11 = vector.broadcast %10 : vector<8x1xf32> to vector<8x8xf32>
    %12 = arith.subf %8, %11 : vector<8x8xf32>
    %13 = math.exp %12 : vector<8x8xf32>
    %cst_13 = arith.constant dense<0.000000e+00> : vector<8xf32>
    %14 = vector.multi_reduction <add>, %13, %cst_13 [1] : vector<8x8xf32> to vector<8xf32>
    %15 = vector.shape_cast %14 : vector<8xf32> to vector<8x1xf32>
    %16 = tpu.reciprocal %15 : vector<8x1xf32> -> vector<8x1xf32>
    %17 = vector.broadcast %16 : vector<8x1xf32> to vector<8x8xf32>
    %18 = arith.mulf %13, %17 : vector<8x8xf32>
    %cst_14 = arith.constant dense<0.000000e+00> : vector<8x32xf32>
    %19 = tpu.matmul %18, %7, %cst_14 {dimension_numbers = #tpu.dot_dimension_numbers<[1], [0], [0], [1], [0, 0, 1, 1], [], []>} : vector<8x8xf32>, vector<8x32xf32>, vector<8x32xf32> -> vector<8x32xf32>
    %c0_15 = arith.constant 0 : index
    %c0_16 = arith.constant 0 : index
    %c0_17 = arith.constant 0 : index
    %c0_18 = arith.constant 0 : index
    %20 = vector.load %arg6[%c0_15, %c0_16, %c0_17, %c0_18] : memref<1x1x8x32xf32, #tpu.memory_space<vmem>>, vector<1x1x8x32xf32>
    %21 = vector.shape_cast %20 : vector<1x1x8x32xf32> to vector<8x32xf32>
    %22 = vector.shape_cast %19 : vector<8x32xf32> to vector<1x1x8x32xf32>
    tpu.vector_store %arg6[%c0_15, %c0_16, %c0_17, %c0_18], %22 {strides = array<i32>} : memref<1x1x8x32xf32, #tpu.memory_space<vmem>>, vector<1x1x8x32xf32>,
    %c0_19 = arith.constant 0 : index
    %c0_20 = arith.constant 0 : index
    %c0_21 = arith.constant 0 : index
    %c0_22 = arith.constant 0 : index
    %23 = vector.load %arg7[%c0_19, %c0_20, %c0_21, %c0_22] : memref<1x1x8x8xf32, #tpu.memory_space<vmem>>, vector<1x1x8x8xf32>
    %24 = vector.shape_cast %23 : vector<1x1x8x8xf32> to vector<8x8xf32>
    %25 = vector.shape_cast %18 : vector<8x8xf32> to vector<1x1x8x8xf32>
    tpu.vector_store %arg7[%c0_19, %c0_20, %c0_21, %c0_22], %25 {strides = array<i32>} : memref<1x1x8x8xf32, #tpu.memory_space<vmem>>, vector<1x1x8x8xf32>,
    return
  }
  func.func @transform_0(%arg0: i32, %arg1: i32, %arg2: i32) -> (i32, i32, i32, i32) {
    %c0_i32 = arith.constant 0 : i32
    %c0_i32_0 = arith.constant 0 : i32
    return %arg0, %arg1, %arg2, %c0_i32 : i32, i32, i32, i32
  }
  func.func @transform_1(%arg0: i32, %arg1: i32, %arg2: i32) -> (i32, i32, i32, i32) {
    %c0_i32 = arith.constant 0 : i32
    %c0_i32_0 = arith.constant 0 : i32
    %c0_i32_1 = arith.constant 0 : i32
    return %arg0, %arg1, %c0_i32, %c0_i32_0 : i32, i32, i32, i32
  }
  func.func @transform_2(%arg0: i32, %arg1: i32, %arg2: i32) -> (i32, i32, i32, i32) {
    %c0_i32 = arith.constant 0 : i32
    %c0_i32_0 = arith.constant 0 : i32
    %c0_i32_1 = arith.constant 0 : i32
    return %arg0, %arg1, %c0_i32, %c0_i32_0 : i32, i32, i32, i32
  }
  func.func @transform_3(%arg0: i32, %arg1: i32, %arg2: i32) -> (i32, i32, i32, i32) {
    %c0_i32 = arith.constant 0 : i32
    %c0_i32_0 = arith.constant 0 : i32
    return %arg0, %arg1, %arg2, %c0_i32 : i32, i32, i32, i32
  }
  func.func @transform_4(%arg0: i32, %arg1: i32, %arg2: i32) -> (i32, i32, i32, i32) {
    %c0_i32 = arith.constant 0 : i32
    %c0_i32_0 = arith.constant 0 : i32
    return %arg0, %arg1, %arg2, %c0_i32 : i32, i32, i32, i32
  }
}

</mosaic_0001>

<llo_original>
// kernel: tpu_custom_call.1
$region0: #{tpu_custom_call.1}
  #allocation0 [shape = 'u32[]', space=smem, size = 0x4, offset = 0x4, fixed_abs, tag = 'smem constant byte address 0x4 - core index']
  #allocation1 [shape = 'u32[144,128]{1,0:T(1,128)}', space=vmem, size = 0x12000, scoped, tag = 'internal scratch']
  %s0 = inlined_call_operand.hbm [shape: f32[2,4,8,32], index: 0, kind: input, shape index: {}]
  %s1 = inlined_call_operand.hbm [shape: f32[2,4,8,32], index: 1, kind: input, shape index: {}]
  %s2 = inlined_call_operand.hbm [shape: f32[2,4,8,32], index: 2, kind: input, shape index: {}]
  %s3 = inlined_call_operand.hbm [shape: f32[2,4,8,32], index: 3, kind: output, shape index: {0}]
  %s4 = inlined_call_operand.hbm [shape: f32[2,4,8,8], index: 4, kind: output, shape index: {1}]
  %5 = xla_tuple %s3, %s4
  %s6 = sld [smem:[#allocation0]]
  $region65: #{tpu_custom_call.1} parent=0
    _
  %s8 = ssub.s32 1, %s6
  %s9 = scalar_select 0, %s8, %s6
  $region1: #{tpu_custom_call.1} parent=0
    #allocation2 [shape = 'u8[8192]{0}', space=vmem, size = 0x2000, scoped, tag = 'input window, operand 0']
    #allocation3 [shape = 's32[2]{0}', space=sflag, size = 0x8, scoped, tag = 'scoped memory for tpu_custom_call.1']
    #allocation4 [shape = 's32[2]{0}', space=sflag, size = 0x8, scoped, tag = 'scoped memory for tpu_custom_call.1']
    #allocation5 [shape = 'u8[8192]{0}', space=vmem, size = 0x2000, scoped, tag = 'input window, operand 1']
    #allocation6 [shape = 's32[2]{0}', space=sflag, size = 0x8, scoped, tag = 'scoped memory for tpu_custom_call.1']
    #allocation7 [shape = 'u8[8192]{0}', space=vmem, size = 0x2000, scoped, tag = 'input window, operand 2']
    #allocation8 [shape = 'u8[8192]{0}', space=vmem, size = 0x2000, scoped, tag = 'output window, operand 0']
    #allocation9 [shape = 'u8[8192]{0}', space=vmem, size = 0x2000, scoped, tag = 'output window, operand 1']
    #allocation10 [shape = 's32[2]{0}', space=sflag, size = 0x8, scoped, tag = 'scoped memory for tpu_custom_call.1']
    %10 = vsyncpa [#allocation3], 0
    %s11 = scalar_lea.sflag [#allocation3], 1
    %12 = vsyncpa %s11, 0
    %13 = vsyncpa [#allocation6], 0
    %s14 = scalar_lea.sflag [#allocation6], 1
    %15 = vsyncpa %s14, 0
    %16 = vsyncpa [#allocation4], 0
    %s17 = scalar_lea.sflag [#allocation4], 1
    %18 = vsyncpa %s17, 0
    %19 = vsyncpa [#allocation10], 0
    %s20 = scalar_lea.sflag [#allocation10], 1
    %21 = vsyncpa %s20, 0
    loop: start=0, step=1, limit=10
    $region2: #{tpu_custom_call.1} parent=1 // loop_pre_header
      _
    $region3: #{tpu_custom_call.1} parent=1 // loop_header
      %s23 = sphi 0, %s27
      %p24 = scmp.ge.s32.totalorder %s23, 10
      %s30 = sphi 0, %s49
      %s31 = sphi 0, %s45
      %s32 = sphi 0, %s41
      %s33 = sphi 0, %s30
      %s34 = sphi 0, %s31
      %s35 = sphi 0, %s32
      %s36 = sphi 0, %s33
      %s37 = sphi 0, %s34
      %s38 = sphi 0, %s35
      %s56 = sphi 0, %s58
      %s59 = sphi 0, %s56
      %s60 = sphi 0, %s59
      %s76 = sphi 0, %s60
      %s84 = sphi 0, %s86
      %s87 = sphi 0, %s84
      %s88 = sphi 0, %s87
      %s104 = sphi 0, %s88
      %s112 = sphi 0, %s114
      %s115 = sphi 0, %s112
      %s116 = sphi 0, %s115
      %s132 = sphi 0, %s116
      %s142 = sphi 0, %s144
      %s145 = sphi 0, %s142
      %s146 = sphi 0, %s145
      %s162 = sphi 0, %s146
      %s172 = sphi 0, %s174
      %s175 = sphi 0, %s172
      %s176 = sphi 0, %s175
      %s192 = sphi 0, %s176
    $region4: #{tpu_custom_call.1} parent=1 // loop_header_branch
      %26 = sbr.rel (%p24) target = $region8
    $region5: #{tpu_custom_call.1} parent=1 // loop_body
      %s28 = ssub.s32 %s23, 1
      %s29 = ssub.s32 %s23, 2
      %s39 = sadd.s32 1, %s32
      %p40 = scmp.ge.s32.totalorder %s39, 1
      %s41 = scalar_select %p40, 0, %s39
      %s42 = sadd.s32 1, %s31
      %s43 = scalar_select %p40, %s42, %s31
      %p44 = scmp.ge.s32.totalorder %s43, 4
      %s45 = scalar_select %p44, 0, %s43
      %s46 = sadd.s32 1, %s30
      %s47 = scalar_select %p44, %s46, %s30
      %p48 = scmp.ge.s32.totalorder %s47, 2
      %s49 = scalar_select %p48, 0, %s47
      %s50 = ssub.s32 %s30, %s49
      %s51 = ssub.s32 %s31, %s45
      %s52 = sor.u32 %s50, %s51
      %s53 = ssub.s32 %s32, %s41
      %s54 = sor.u32 %s52, %s53
      %p55 = scmp.eq.s32.totalorder %s54, 0
      %s57 = sadd.s32 %s56, 1
      %s58 = scalar_select %p55, %s56, %s57
      %p61 = pneg %p55
      %p62 = scmp.eq.s32.totalorder %s23, 7
      %p63 = por %p61, %p62
      %p64 = scmp.ne.s32.totalorder %s56, %s59
      %p65 = scmp.eq.s32.totalorder %s23, 0
      %p66 = por %p64, %p65
      %p67 = scmp.ne.s32.totalorder %s56, %s59
      %p68 = scmp.eq.s32.totalorder %s28, 7
      %p69 = por %p67, %p68
      %p70 = scmp.ne.s32.totalorder %s59, %s60
      %p71 = scmp.eq.s32.totalorder %s28, 0
      %p72 = por %p70, %p71
      %p73 = scmp.ne.s32.totalorder %s59, %s60
      %p74 = scmp.eq.s32.totalorder %s29, 7
      %p75 = por %p73, %p74
      %p77 = scmp.ne.s32.totalorder %s60, %s76
      %p78 = scmp.eq.s32.totalorder %s29, 0
      %p79 = por %p77, %p78
      %s80 = ssub.s32 %s30, %s49
      %s81 = ssub.s32 %s31, %s45
      %s82 = sor.u32 %s80, %s81
      %p83 = scmp.eq.s32.totalorder %s82, 0
      %s85 = sadd.s32 %s84, 1
      %s86 = scalar_select %p83, %s84, %s85
      %p89 = pneg %p83
      %p90 = scmp.eq.s32.totalorder %s23, 7
      %p91 = por %p89, %p90
      %p92 = scmp.ne.s32.totalorder %s84, %s87
      %p93 = scmp.eq.s32.totalorder %s23, 0
      %p94 = por %p92, %p93
      %p95 = scmp.ne.s32.totalorder %s84, %s87
      %p96 = scmp.eq.s32.totalorder %s28, 7
      %p97 = por %p95, %p96
      %p98 = scmp.ne.s32.totalorder %s87, %s88
      %p99 = scmp.eq.s32.totalorder %s28, 0
      %p100 = por %p98, %p99
      %p101 = scmp.ne.s32.totalorder %s87, %s88
      %p102 = scmp.eq.s32.totalorder %s29, 7
      %p103 = por %p101, %p102
      %p105 = scmp.ne.s32.totalorder %s88, %s104
      %p106 = scmp.eq.s32.totalorder %s29, 0
      %p107 = por %p105, %p106
      %s108 = ssub.s32 %s30, %s49
      %s109 = ssub.s32 %s31, %s45
      %s110 = sor.u32 %s108, %s109
      %p111 = scmp.eq.s32.totalorder %s110, 0
      %s113 = sadd.s32 %s112, 1
      %s114 = scalar_select %p111, %s112, %s113
      %p117 = pneg %p111
      %p118 = scmp.eq.s32.totalorder %s23, 7
      %p119 = por %p117, %p118
      %p120 = scmp.ne.s32.totalorder %s112, %s115
      %p121 = scmp.eq.s32.totalorder %s23, 0
      %p122 = por %p120, %p121
      %p123 = scmp.ne.s32.totalorder %s112, %s115
      %p124 = scmp.eq.s32.totalorder %s28, 7
      %p125 = por %p123, %p124
      %p126 = scmp.ne.s32.totalorder %s115, %s116
      %p127 = scmp.eq.s32.totalorder %s28, 0
      %p128 = por %p126, %p127
      %p129 = scmp.ne.s32.totalorder %s115, %s116
      %p130 = scmp.eq.s32.totalorder %s29, 7
      %p131 = por %p129, %p130
      %p133 = scmp.ne.s32.totalorder %s116, %s132
      %p134 = scmp.eq.s32.totalorder %s29, 0
      %p135 = por %p133, %p134
      %s136 = ssub.s32 %s30, %s49
      %s137 = ssub.s32 %s31, %s45
      %s138 = sor.u32 %s136, %s137
      %s139 = ssub.s32 %s32, %s41
      %s140 = sor.u32 %s138, %s139
      %p141 = scmp.eq.s32.totalorder %s140, 0
      %s143 = sadd.s32 %s142, 1
      %s144 = scalar_select %p141, %s142, %s143
      %p147 = pneg %p141
      %p148 = scmp.eq.s32.totalorder %s23, 7
      %p149 = por %p147, %p148
      %p150 = scmp.ne.s32.totalorder %s142, %s145
      %p151 = scmp.eq.s32.totalorder %s23, 0
      %p152 = por %p150, %p151
      %p153 = scmp.ne.s32.totalorder %s142, %s145
      %p154 = scmp.eq.s32.totalorder %s28, 7
      %p155 = por %p153, %p154
      %p156 = scmp.ne.s32.totalorder %s145, %s146
      %p157 = scmp.eq.s32.totalorder %s28, 0
      %p158 = por %p156, %p157
      %p159 = scmp.ne.s32.totalorder %s145, %s146
      %p160 = scmp.eq.s32.totalorder %s29, 7
      %p161 = por %p159, %p160
      %p163 = scmp.ne.s32.totalorder %s146, %s162
      %p164 = scmp.eq.s32.totalorder %s29, 0
      %p165 = por %p163, %p164
      %s166 = ssub.s32 %s30, %s49
      %s167 = ssub.s32 %s31, %s45
      %s168 = sor.u32 %s166, %s167
      %s169 = ssub.s32 %s32, %s41
      %s170 = sor.u32 %s168, %s169
      %p171 = scmp.eq.s32.totalorder %s170, 0
      %s173 = sadd.s32 %s172, 1
      %s174 = scalar_select %p171, %s172, %s173
      %p177 = pneg %p171
      %p178 = scmp.eq.s32.totalorder %s23, 7
      %p179 = por %p177, %p178
      %p180 = scmp.ne.s32.totalorder %s172, %s175
      %p181 = scmp.eq.s32.totalorder %s23, 0
      %p182 = por %p180, %p181
      %p183 = scmp.ne.s32.totalorder %s172, %s175
      %p184 = scmp.eq.s32.totalorder %s28, 7
      %p185 = por %p183, %p184
      %p186 = scmp.ne.s32.totalorder %s175, %s176
      %p187 = scmp.eq.s32.totalorder %s28, 0
      %p188 = por %p186, %p187
      %p189 = scmp.ne.s32.totalorder %s175, %s176
      %p190 = scmp.eq.s32.totalorder %s29, 7
      %p191 = por %p189, %p190
      %p193 = scmp.ne.s32.totalorder %s176, %s192
      %p194 = scmp.eq.s32.totalorder %s29, 0
      %p195 = por %p193, %p194
      %p196 = scmp.le.s32.totalorder 1, %s23
      %p197 = scmp.lt.s32.totalorder %s23, 9
      %p198 = pnand %p196, %p197
      %p199 = pneg %p198
      // Predicated region
      $region9: #{tpu_custom_call.1} parent=5 // pred_check
        _
      $region10: #{tpu_custom_call.1} parent=5 // pred_check_branch
        %201 = sbr.rel (%p198) target = $region12
      $region11: #{tpu_custom_call.1} parent=5 // pred_region
        %s202 = ssub.s32 %s23, 1
      $region12: #{tpu_custom_call.1} parent=5 // pred_fallthru
        _
      %p203 = scmp.lt.s32.totalorder %s23, 8
      // Predicated region
      $region13: #{tpu_custom_call.1} parent=5 // pred_check
        %p204 = pneg %p203
      $region14: #{tpu_custom_call.1} parent=5 // pred_check_branch
        %206 = sbr.rel (%p204) target = $region16
      $region15: #{tpu_custom_call.1} parent=5 // pred_region
        // Predicated region
        $region17: #{tpu_custom_call.1} parent=15 // pred_check
          %p207 = pneg %p66
        $region18: #{tpu_custom_call.1} parent=15 // pred_check_branch
          %209 = sbr.rel (%p207) target = $region20
        $region19: #{tpu_custom_call.1} parent=15 // pred_region
          %s210 = sand.u32 %s56, 1
          %s211 = scalar_lea.sflag [#allocation3], %s210
          %s212 = sand.u32 %s56, 1
          %s213 = smul.addr %s212, 8
          %s214 = scalar_lea.vmem [#allocation2], %s213
          %s216 = ssub.s32 128, 128
          %217 = vsyncadd %s211, %s216
          %s218 = sadd.s32 %s32, %s31
          %s219 = smul.addr %s30, 4
          %s220 = sadd.s32 %s218, %s219
          %s221 = smul.addr %s220, 128
          %s222 = scalar_lea.hbm %s0, %s221
          %s224 = sshll.u32 %s214, 4
          %s225 = int_to_ptr.vmem [resolvable:$true] %s224
          %227 = dma.hbm_to_vmem [thread:$0]  %s222, 128, %s225, %s211
        $region20: #{tpu_custom_call.1} parent=15 // pred_fallthru
          _
        // Predicated region
        $region21: #{tpu_custom_call.1} parent=15 // pred_check
          %p228 = pneg %p94
        $region22: #{tpu_custom_call.1} parent=15 // pred_check_branch
          %230 = sbr.rel (%p228) target = $region24
        $region23: #{tpu_custom_call.1} parent=15 // pred_region
          %s231 = sand.u32 %s23, 1
          %s232 = scalar_lea.sflag [#allocation6], %s231
          %s233 = sand.u32 %s84, 1
          %s234 = smul.addr %s233, 8
          %s235 = scalar_lea.vmem [#allocation5], %s234
          %s237 = ssub.s32 128, 128
          %238 = vsyncadd %s232, %s237
          %s239 = smul.addr %s30, 4
          %s240 = sadd.s32 %s31, %s239
          %s241 = smul.addr %s240, 128
          %s242 = scalar_lea.hbm %s1, %s241
          %s244 = sshll.u32 %s235, 4
          %s245 = int_to_ptr.vmem [resolvable:$true] %s244
          %247 = dma.hbm_to_vmem [thread:$0]  %s242, 128, %s245, %s232
        $region24: #{tpu_custom_call.1} parent=15 // pred_fallthru
          _
        // Predicated region
        $region25: #{tpu_custom_call.1} parent=15 // pred_check
          %p248 = pneg %p122
        $region26: #{tpu_custom_call.1} parent=15 // pred_check_branch
          %250 = sbr.rel (%p248) target = $region28
        $region27: #{tpu_custom_call.1} parent=15 // pred_region
          %s251 = sand.u32 %s23, 1
          %s252 = scalar_lea.sflag [#allocation6], %s251
          %s253 = sand.u32 %s112, 1
          %s254 = smul.addr %s253, 8
          %s255 = scalar_lea.vmem [#allocation7], %s254
          %s257 = ssub.s32 128, 128
          %258 = vsyncadd %s252, %s257
          %s259 = smul.addr %s30, 4
          %s260 = sadd.s32 %s31, %s259
          %s261 = smul.addr %s260, 128
          %s262 = scalar_lea.hbm %s2, %s261
          %s264 = sshll.u32 %s255, 4
          %s265 = int_to_ptr.vmem [resolvable:$true] %s264
          %267 = dma.hbm_to_vmem [thread:$0]  %s262, 128, %s265, %s252
        $region28: #{tpu_custom_call.1} parent=15 // pred_fallthru
          _
      $region16: #{tpu_custom_call.1} parent=5 // pred_fallthru
        _
      %p268 = scmp.le.s32.totalorder 1, %s23
      %p269 = scmp.lt.s32.totalorder %s23, 9
      %p270 = pnand %p268, %p269
      %p271 = pneg %p270
      // Predicated region
      $region29: #{tpu_custom_call.1} parent=5 // pred_check
        _
      $region30: #{tpu_custom_call.1} parent=5 // pred_check_branch
        %273 = sbr.rel (%p270) target = $region32
      $region31: #{tpu_custom_call.1} parent=5 // pred_region
        %s274 = ssub.s32 %s23, 1
        %s275 = sand.u32 %s59, 1
        %s276 = scalar_lea.sflag [#allocation3], %s275
        %s277 = sand.u32 %s59, 1
        %s278 = smul.addr %s277, 8
        %s279 = scalar_lea.vmem [#allocation2], %s278
        // Predicated region
        $region33: #{tpu_custom_call.1} parent=31 // pred_check
          %p280 = pneg %p72
        $region34: #{tpu_custom_call.1} parent=31 // pred_check_branch
          %282 = sbr.rel (%p280) target = $region36
        $region35: #{tpu_custom_call.1} parent=31 // pred_region
          %283 = dma.done %s276, 128
        $region36: #{tpu_custom_call.1} parent=31 // pred_fallthru
          _
        %s284 = sand.u32 %s28, 1
        %s285 = scalar_lea.sflag [#allocation6], %s284
        %s286 = sand.u32 %s87, 1
        %s287 = smul.addr %s286, 8
        %s288 = scalar_lea.vmem [#allocation5], %s287
        // Predicated region
        $region37: #{tpu_custom_call.1} parent=31 // pred_check
          %p289 = pneg %p100
        $region38: #{tpu_custom_call.1} parent=31 // pred_check_branch
          %291 = sbr.rel (%p289) target = $region40
        $region39: #{tpu_custom_call.1} parent=31 // pred_region
          %292 = dma.done %s285, 128
        $region40: #{tpu_custom_call.1} parent=31 // pred_fallthru
          _
        %s293 = sand.u32 %s28, 1
        %s294 = scalar_lea.sflag [#allocation6], %s293
        %s295 = sand.u32 %s115, 1
        %s296 = smul.addr %s295, 8
        %s297 = scalar_lea.vmem [#allocation7], %s296
        // Predicated region
        $region41: #{tpu_custom_call.1} parent=31 // pred_check
          %p298 = pneg %p128
        $region42: #{tpu_custom_call.1} parent=31 // pred_check_branch
          %300 = sbr.rel (%p298) target = $region44
        $region43: #{tpu_custom_call.1} parent=31 // pred_region
          %301 = dma.done %s294, 128
        $region44: #{tpu_custom_call.1} parent=31 // pred_fallthru
          _
        %s302 = sand.u32 %s59, 1
        %s303 = scalar_lea.sflag [#allocation3], %s302
        %s304 = sand.u32 %s59, 1
        %s305 = smul.addr %s304, 8
        %s306 = scalar_lea.vmem [#allocation2], %s305
        %p307 = pneg %p72
        %p308 = pneg %p69
        %s309 = sand.u32 %s28, 1
        %s310 = scalar_lea.sflag [#allocation6], %s309
        %s311 = sand.u32 %s87, 1
        %s312 = smul.addr %s311, 8
        %s313 = scalar_lea.vmem [#allocation5], %s312
        %p314 = pneg %p100
        %p315 = pneg %p97
        %s316 = sand.u32 %s28, 1
        %s317 = scalar_lea.sflag [#allocation6], %s316
        %s318 = sand.u32 %s115, 1
        %s319 = smul.addr %s318, 8
        %s320 = scalar_lea.vmem [#allocation7], %s319
        %p321 = pneg %p128
        %p322 = pneg %p125
        %p323 = pneg %p158
        %p324 = pneg %p155
        %s325 = sand.u32 %s145, 1
        %s326 = scalar_lea.sflag [#allocation4], %s325
        %s327 = sand.u32 %s145, 1
        %s328 = smul.addr %s327, 8
        %s329 = scalar_lea.vmem [#allocation8], %s328
        %p330 = pneg %p188
        %p331 = pneg %p185
        %s332 = sand.u32 %s175, 1
        %s333 = scalar_lea.sflag [#allocation10], %s332
        %s334 = sand.u32 %s175, 1
        %s335 = smul.addr %s334, 8
        %s336 = scalar_lea.vmem [#allocation9], %s335
        %v337 = vld [vmem:[%s279] sm:$0xff]
        %v338 = vmul.f32 %v337, 0.17677669
        %v339 = vld [vmem:[%s288] sm:$0xff]
        %v340 = vld [vmem:[%s297] sm:$0xff]
        %vm341 = vcmask 261120
        %v343 = vsel %vm341, %v338, 0
        %v346 = vsel %vm341, %v339, 0
        %348 = vmatprep.subr.mxu0 0.0
        %349 = vmatpush1.xpose.msra.mxu0 %v346
        %350 = vmatprep.subr.mxu0 0.0
        %351 = vmatpush1.xpose.msra.mxu0 0.0
        %352 = vmatprep.subr.mxu0 0.0
        %353 = vmatpush1.xpose.msra.mxu0 0.0
        %354 = vmatprep.subr.mxu0 0.0
        %355 = vmatpush1.xpose.msra.mxu0 0.0
        %356 = vmatprep.subr.mxu0 0.0
        %357 = vmatpush1.xpose.msra.mxu0 0.0
        %358 = vmatprep.subr.mxu0 0.0
        %359 = vmatpush1.xpose.msra.mxu0 0.0
        %360 = vmatprep.subr.mxu0 0.0
        %361 = vmatpush1.xpose.msra.mxu0 0.0
        %362 = vmatprep.subr.mxu0 0.0
        %363 = vmatpush1.xpose.msra.mxu0 0.0
        %364 = vmatprep.subr.mxu0 0.0
        %365 = vmatpush1.xpose.msra.mxu0 0.0
        %366 = vmatprep.subr.mxu0 0.0
        %367 = vmatpush1.xpose.msra.mxu0 0.0
        %368 = vmatprep.subr.mxu0 0.0
        %369 = vmatpush1.xpose.msra.mxu0 0.0
        %370 = vmatprep.subr.mxu0 0.0
        %371 = vmatpush1.xpose.msra.mxu0 0.0
        %372 = vmatprep.subr.mxu0 0.0
        %373 = vmatpush1.xpose.msra.mxu0 0.0
        %374 = vmatprep.subr.mxu0 0.0
        %375 = vmatpush1.xpose.msra.mxu0 0.0
        %376 = vmatprep.subr.mxu0 0.0
        %377 = vmatpush1.xpose.msra.mxu0 0.0
        %378 = vmatprep.subr.mxu0 0.0
        %379 = vmatpush1.xpose.msra.mxu0 0.0
        %380 = vmatprep.subr.mxu0 0.0
        %381 = vmatpush1.xpose.msra.mxu0 0.0
        %382 = vmatprep.subr.mxu0 0.0
        %383 = vmatpush1.xpose.msra.mxu0 0.0
        %384 = vmatprep.subr.mxu0 0.0
        %385 = vmatpush1.xpose.msra.mxu0 0.0
        %386 = vmatprep.subr.mxu0 0.0
        %387 = vmatpush1.xpose.msra.mxu0 0.0
        %388 = vmatprep.subr.mxu0 0.0
        %389 = vmatpush1.xpose.msra.mxu0 0.0
        %390 = vmatprep.subr.mxu0 0.0
        %391 = vmatpush1.xpose.msra.mxu0 0.0
        %392 = vmatprep.subr.mxu0 0.0
        %393 = vmatpush1.xpose.msra.mxu0 0.0
        %394 = vmatprep.subr.mxu0 0.0
        %395 = vmatpush1.xpose.msra.mxu0 0.0
        %396 = vmatprep.subr.mxu0 0.0
        %397 = vmatpush1.xpose.msra.mxu0 0.0
        %398 = vmatprep.subr.mxu0 0.0
        %399 = vmatpush1.xpose.msra.mxu0 0.0
        %400 = vmatprep.subr.mxu0 0.0
        %401 = vmatpush1.xpose.msra.mxu0 0.0
        %402 = vmatprep.subr.mxu0 0.0
        %403 = vmatpush1.xpose.msra.mxu0 0.0
        %404 = vmatprep.subr.mxu0 0.0
        %405 = vmatpush1.xpose.msra.mxu0 0.0
        %406 = vmatprep.subr.mxu0 0.0
        %407 = vmatpush1.xpose.msra.mxu0 0.0
        %408 = vmatprep.subr.mxu0 0.0
        %409 = vmatpush1.xpose.msra.mxu0 0.0
        %410 = vmatprep.subr.mxu0 0.0
        %411 = vmatpush1.xpose.msra.mxu0 0.0
        %412 = vmatprep.mubr.f32.mxu0 0.0
        %413 = vmatmul.mubr.f32.gmra.mrb[0].mxu0 %v343
        %v414 = vpop.f32.mrb[0].mxu0
        %v415 = vadd.f32 0.0, %v414
        %v416 = vpop.f32.mrb[0].mxu0
        %417 = vdwg.mxu0
        %vm418 = vcmask 64512
        %v419 = vsel %vm418, %v415, -inf
        %420 = vmax.xlane.f32.xlu0 %v419
        %v421 = vpop.xlane.xlu0 %420
        %v422 = vsub.f32 %v415, %v421
        %v423 = vmul.f32 %v422, 1.442695
        %v424 = vpow.pop %v423
        %v425 = vsel %vm418, %v424, 0.0
        %426 = vadd.xlane.f32.xlu0 %v425
        %v427 = vpop.xlane.xlu0 %426
        %v428 = vrcp.pop %v427
        %v429 = vmul.f32 %v424, %v428
        %v431 = vsel %vm418, %v429, 0
        %433 = vmatprep.subr.mxu0 0.0
        %434 = vmatpush1.msra.mxu0 %v340
        %435 = vmatprep.subr.mxu0 0.0
        %436 = vmatpush1.msra.mxu0 0.0
        %437 = vmatprep.subr.mxu0 0.0
        %438 = vmatpush1.msra.mxu0 0.0
        %439 = vmatprep.subr.mxu0 0.0
        %440 = vmatpush1.msra.mxu0 0.0
        %441 = vmatprep.subr.mxu0 0.0
        %442 = vmatpush1.msra.mxu0 0.0
        %443 = vmatprep.subr.mxu0 0.0
        %444 = vmatpush1.msra.mxu0 0.0
        %445 = vmatprep.subr.mxu0 0.0
        %446 = vmatpush1.msra.mxu0 0.0
        %447 = vmatprep.subr.mxu0 0.0
        %448 = vmatpush1.msra.mxu0 0.0
        %449 = vmatprep.subr.mxu0 0.0
        %450 = vmatpush1.msra.mxu0 0.0
        %451 = vmatprep.subr.mxu0 0.0
        %452 = vmatpush1.msra.mxu0 0.0
        %453 = vmatprep.subr.mxu0 0.0
        %454 = vmatpush1.msra.mxu0 0.0
        %455 = vmatprep.subr.mxu0 0.0
        %456 = vmatpush1.msra.mxu0 0.0
        %457 = vmatprep.subr.mxu0 0.0
        %458 = vmatpush1.msra.mxu0 0.0
        %459 = vmatprep.subr.mxu0 0.0
        %460 = vmatpush1.msra.mxu0 0.0
        %461 = vmatprep.subr.mxu0 0.0
        %462 = vmatpush1.msra.mxu0 0.0
        %463 = vmatprep.subr.mxu0 0.0
        %464 = vmatpush1.msra.mxu0 0.0
        %465 = vmatprep.subr.mxu0 0.0
        %466 = vmatpush1.msra.mxu0 0.0
        %467 = vmatprep.subr.mxu0 0.0
        %468 = vmatpush1.msra.mxu0 0.0
        %469 = vmatprep.subr.mxu0 0.0
        %470 = vmatpush1.msra.mxu0 0.0
        %471 = vmatprep.subr.mxu0 0.0
        %472 = vmatpush1.msra.mxu0 0.0
        %473 = vmatprep.subr.mxu0 0.0
        %474 = vmatpush1.msra.mxu0 0.0
        %475 = vmatprep.subr.mxu0 0.0
        %476 = vmatpush1.msra.mxu0 0.0
        %477 = vmatprep.subr.mxu0 0.0
        %478 = vmatpush1.msra.mxu0 0.0
        %479 = vmatprep.subr.mxu0 0.0
        %480 = vmatpush1.msra.mxu0 0.0
        %481 = vmatprep.subr.mxu0 0.0
        %482 = vmatpush1.msra.mxu0 0.0
        %483 = vmatprep.subr.mxu0 0.0
        %484 = vmatpush1.msra.mxu0 0.0
        %485 = vmatprep.subr.mxu0 0.0
        %486 = vmatpush1.msra.mxu0 0.0
        %487 = vmatprep.subr.mxu0 0.0
        %488 = vmatpush1.msra.mxu0 0.0
        %489 = vmatprep.subr.mxu0 0.0
        %490 = vmatpush1.msra.mxu0 0.0
        %491 = vmatprep.subr.mxu0 0.0
        %492 = vmatpush1.msra.mxu0 0.0
        %493 = vmatprep.subr.mxu0 0.0
        %494 = vmatpush1.msra.mxu0 0.0
        %495 = vmatprep.subr.mxu0 0.0
        %496 = vmatpush1.msra.mxu0 0.0
        %497 = vmatprep.mubr.f32.mxu0 0.0
        %498 = vmatmul.mubr.f32.gmra.mrb[0].mxu0 %v431
        %v499 = vpop.f32.mrb[0].mxu0
        %v500 = vadd.f32 0.0, %v499
        %v501 = vpop.f32.mrb[0].mxu0
        %502 = vdwg.mxu0
        %503 = vst.msk [vmem:[%s329] sm:$0xff] %vm341, %v500
        %504 = vst.msk [vmem:[%s336] sm:$0xff] %vm418, %v429
        %s505 = sand.u32 %s145, 1
        %s506 = scalar_lea.sflag [#allocation4], %s505
        %s507 = sand.u32 %s145, 1
        %s508 = smul.addr %s507, 8
        %s509 = scalar_lea.vmem [#allocation8], %s508
        %s510 = sand.u32 %s175, 1
        %s511 = scalar_lea.sflag [#allocation10], %s510
        %s512 = sand.u32 %s175, 1
        %s513 = smul.addr %s512, 8
        %s514 = scalar_lea.vmem [#allocation9], %s513
        // Predicated region
        $region45: #{tpu_custom_call.1} parent=31 // pred_check
          %p515 = pneg %p155
        $region46: #{tpu_custom_call.1} parent=31 // pred_check_branch
          %517 = sbr.rel (%p515) target = $region48
        $region47: #{tpu_custom_call.1} parent=31 // pred_region
          %s519 = ssub.s32 128, 128
          %520 = vsyncadd %s506, %s519
          %s521 = sadd.s32 %s35, %s34
          %s522 = smul.addr %s33, 4
          %s523 = sadd.s32 %s521, %s522
          %s524 = smul.addr %s523, 128
          %s525 = scalar_lea.hbm %s3, %s524
          %s527 = sshll.u32 %s509, 4
          %s528 = int_to_ptr.vmem [resolvable:$true] %s527
          %530 = dma.vmem_to_hbm [thread:$0]  %s528, 128, %s525, %s506
        $region48: #{tpu_custom_call.1} parent=31 // pred_fallthru
          _
        // Predicated region
        $region49: #{tpu_custom_call.1} parent=31 // pred_check
          %p531 = pneg %p185
        $region50: #{tpu_custom_call.1} parent=31 // pred_check_branch
          %533 = sbr.rel (%p531) target = $region52
        $region51: #{tpu_custom_call.1} parent=31 // pred_region
          %s535 = ssub.s32 128, 128
          %536 = vsyncadd %s511, %s535
          %s537 = sadd.s32 %s35, %s34
          %s538 = smul.addr %s33, 4
          %s539 = sadd.s32 %s537, %s538
          %s540 = smul.addr %s539, 128
          %s541 = scalar_lea.hbm %s4, %s540
          %s543 = sshll.u32 %s514, 4
          %s544 = int_to_ptr.vmem [resolvable:$true] %s543
          %546 = dma.vmem_to_hbm [thread:$0]  %s544, 128, %s541, %s511
        $region52: #{tpu_custom_call.1} parent=31 // pred_fallthru
          _
      $region32: #{tpu_custom_call.1} parent=5 // pred_fallthru
        _
      %p547 = scmp.le.s32.totalorder 2, %s23
      // Predicated region
      $region53: #{tpu_custom_call.1} parent=5 // pred_check
        %p548 = pneg %p547
      $region54: #{tpu_custom_call.1} parent=5 // pred_check_branch
        %550 = sbr.rel (%p548) target = $region56
      $region55: #{tpu_custom_call.1} parent=5 // pred_region
        %s551 = ssub.s32 %s23, 2
        // Predicated region
        $region57: #{tpu_custom_call.1} parent=55 // pred_check
          %p552 = pneg %p161
        $region58: #{tpu_custom_call.1} parent=55 // pred_check_branch
          %554 = sbr.rel (%p552) target = $region60
        $region59: #{tpu_custom_call.1} parent=55 // pred_region
          %s555 = sand.u32 %s146, 1
          %s556 = scalar_lea.sflag [#allocation4], %s555
          %s557 = sand.u32 %s146, 1
          %s558 = smul.addr %s557, 8
          %s559 = scalar_lea.vmem [#allocation8], %s558
          %560 = dma.done %s556, 128
        $region60: #{tpu_custom_call.1} parent=55 // pred_fallthru
          _
        // Predicated region
        $region61: #{tpu_custom_call.1} parent=55 // pred_check
          %p561 = pneg %p191
        $region62: #{tpu_custom_call.1} parent=55 // pred_check_branch
          %563 = sbr.rel (%p561) target = $region64
        $region63: #{tpu_custom_call.1} parent=55 // pred_region
          %s564 = sand.u32 %s176, 1
          %s565 = scalar_lea.sflag [#allocation10], %s564
          %s566 = sand.u32 %s176, 1
          %s567 = smul.addr %s566, 8
          %s568 = scalar_lea.vmem [#allocation9], %s567
          %569 = dma.done %s565, 128
        $region64: #{tpu_custom_call.1} parent=55 // pred_fallthru
          _
      $region56: #{tpu_custom_call.1} parent=5 // pred_fallthru
        _
    $region6: #{tpu_custom_call.1} parent=1 // loop_footer
      %s27 = sadd.s32 1, %s23
    $region7: #{tpu_custom_call.1} parent=1 // loop_footer_branch
      %22 = sbr.rel target = $region3
    $region8: #{tpu_custom_call.1} parent=1 // loop_exit
      _
    %570 = vsyncpa [#allocation3], 1
    %s571 = scalar_lea.sflag [#allocation3], 1
    %572 = vsyncpa %s571, 1
    %573 = vsyncpa [#allocation6], 1
    %s574 = scalar_lea.sflag [#allocation6], 1
    %575 = vsyncpa %s574, 1
    %576 = vsyncpa [#allocation4], 1
    %s577 = scalar_lea.sflag [#allocation4], 1
    %578 = vsyncpa %s577, 1
    %579 = vsyncpa [#allocation10], 1
    %s580 = scalar_lea.sflag [#allocation10], 1
    %581 = vsyncpa %s580, 1

</llo_original>
